<compile_context>
chip_gen: v7x
topology: tpu7x:2x2x1
jax: 0.10.0
libtpu: 0.0.40
codegen_flags: <defaults>
</compile_context>

<pallas_src>
import functools
import math

import jax
import jax.numpy as jnp
from jax.experimental import pallas as pl
from jax.experimental.pallas import tpu as pltpu

LOG_STD_MAX = 5.0
LOG_STD_MIN = -20.0
IN_FEATURES = 348          # fixed by the PyTorch module (Linear(348, hidden))
ACTION_SCALE = 0.4
EPS = 1e-6
LANE = 128


def _cdiv(a, b):
    return -(-a // b)


def _round_up(n, m):
    return _cdiv(n, m) * m


# ----------------------------------------------------------------------------
# Kernel
# ----------------------------------------------------------------------------
def policy_kernel(x_ref, w1_ref, b1_ref, w2_ref, b2_ref, wh_ref, bh_ref,
                  noise_ref, action_ref, logp_ref, *, action_size):
    bf16 = jnp.bfloat16
    # x arrives unpadded (TB, 348) f32; cast to bf16 in-register (free VPU op).
    x = x_ref[...].astype(bf16)

    # --- backbone (bf16 operands, f32 accumulation) ---------------------------
    # Faithful to the PyTorch code: lin2 consumes the PRE-ReLU lin1 output.
    h1 = jnp.dot(x, w1_ref[...], preferred_element_type=jnp.float32) + b1_ref[...]
    a1 = jnp.maximum(h1, 0.0)                               # x_1 = relu(lin1(x))
    h2 = jnp.dot(h1.astype(bf16), w2_ref[...],
                 preferred_element_type=jnp.float32) + b2_ref[...]
    h2 = jnp.maximum(h2, 0.0)                               # relu(lin2(lin1(x)))
    h = (h2 + a1).astype(bf16)                              # residual add

    # --- packed heads: mean in lanes [0,A), deviation at lane offset half -----
    head = jnp.dot(h, wh_ref[...], preferred_element_type=jnp.float32) + bh_ref[...]
    half = head.shape[-1] // 2                               # 64 when 2*A <= 128
    dev_aligned = pltpu.roll(head, shift=half, axis=1)       # XLU: swap halves

    mean = head[:, :action_size]                             # (TB, A)
    log_dev = jnp.clip(dev_aligned[:, :action_size], LOG_STD_MIN, LOG_STD_MAX)
    std = jnp.exp(log_dev)

    # --- reparameterized Gaussian sample + tanh squash ------------------------
    noise = noise_ref[...]                                   # (TB, A) std-normal
    pre = mean + std * noise                                 # ~ Normal(mean, std)
    action = jnp.tanh(pre) * ACTION_SCALE

    # --- log prob --------------------------------------------------------------
    # Normal(mean, std).log_prob(pre) = -(pre-mean)^2/(2 var) - log_dev - .5 log(2pi)
    # and (pre - mean) == std * noise exactly, so the quadratic term is -0.5*noise^2.
    lp = -0.5 * (noise * noise) - log_dev - 0.5 * math.log(2.0 * math.pi)
    corr = jnp.log(1.0 - action * action + EPS)              # as in the reference
    logp = jnp.sum(lp - corr, axis=-1, keepdims=True)        # single fused reduce

    action_ref[...] = action                                 # (TB, A)
    logp_ref[...] = logp                                     # (TB, 1)


# ----------------------------------------------------------------------------
# One-time parameter padding / bf16 cast (hoisted out of the per-call path)
# ----------------------------------------------------------------------------
def prepare_params(w1, b1, w2, b2, wm, bm, wd, bd):
    K, H = w1.shape
    A = wm.shape[1]
    HP = _round_up(H, LANE)
    half = max(64, _round_up(A, LANE))     # deviation lane offset in fused head
    headw = 2 * half                       # 128 when 2*A <= 128
    f32, bf16 = jnp.float32, jnp.bfloat16

    w1p = jnp.zeros((K, HP), f32).at[:, :H].set(w1).astype(bf16)
    b1p = jnp.zeros((1, HP), f32).at[:, :H].set(b1)
    w2p = jnp.zeros((HP, HP), f32).at[:H, :H].set(w2).astype(bf16)
    b2p = jnp.zeros((1, HP), f32).at[:, :H].set(b2)
    whp = (jnp.zeros((HP, headw), f32)
           .at[:H, :A].set(wm)
           .at[:H, half:half + A].set(wd)).astype(bf16)
    bhp = (jnp.zeros((1, headw), f32)
           .at[:, :A].set(bm)
           .at[:, half:half + A].set(bd))
    return w1p, b1p, w2p, b2p, whp, bhp


# ----------------------------------------------------------------------------
# Forward wrapper
# ----------------------------------------------------------------------------
def _choose_tb(B):
    if B <= 8:
        return B                           # single block equal to the array dim
    # >= 2 grid steps (keeps both v7x TensorCores busy), minimal trailing pad,
    # tile capped at 512 rows.
    n_steps = max(2, _cdiv(B, 512))
    return min(512, _round_up(_cdiv(B, n_steps), 8))


def _vmem_estimate(TB, K, HP, HEADW, A):
    act_in = 2 * TB * (K + A) * 4                       # double-buffered x/noise
    act_out = 2 * TB * (A + 1) * 4                      # double-buffered outputs
    weights = 2 * ((K * HP + HP * HP + HP * HEADW) * 2  # bf16 weights (dbl-buf)
                   + (2 * HP + HEADW) * 4)              # f32 biases
    interm = 6 * TB * max(HP, HEADW) * 4                # f32 intermediates
    return act_in + act_out + weights + interm


@jax.jit
def policy_forward(x, noise, w1p, b1p, w2p, b2p, whp, bhp):
    B, K = x.shape
    A = noise.shape[1]
    HP = w1p.shape[1]
    HEADW = whp.shape[1]
    assert 2 * A <= HEADW, "action_size too large for the packed head layout"

    TB = _choose_tb(B)
    # Keep resident weights + tiles + intermediates under a conservative budget
    # (v5e default scoped VMEM is 16 MiB; v7x physical VMEM is 64 MiB).
    while TB > 16 and _vmem_estimate(TB, K, HP, HEADW, A) > 20 * 1024 * 1024:
        TB = max(16, _round_up(TB // 2, 8))
    grid = (_cdiv(B, TB),)

    kernel = functools.partial(policy_kernel, action_size=A)
    action, log_prob = pl.pallas_call(
        kernel,
        out_shape=(jax.ShapeDtypeStruct((B, A), jnp.float32),
                   jax.ShapeDtypeStruct((B, 1), jnp.float32)),
        grid_spec=pltpu.PrefetchScalarGridSpec(
            num_scalar_prefetch=0,
            grid=grid,
            in_specs=[
                pl.BlockSpec((TB, K), lambda i: (i, 0)),        # x tile (unpadded)
                pl.BlockSpec((K, HP), lambda i: (0, 0)),        # w1 bf16, resident
                pl.BlockSpec((1, HP), lambda i: (0, 0)),        # b1
                pl.BlockSpec((HP, HP), lambda i: (0, 0)),       # w2 bf16, resident
                pl.BlockSpec((1, HP), lambda i: (0, 0)),        # b2
                pl.BlockSpec((HP, HEADW), lambda i: (0, 0)),    # packed head W
                pl.BlockSpec((1, HEADW), lambda i: (0, 0)),     # packed head b
                pl.BlockSpec((TB, A), lambda i: (i, 0)),        # noise (unpadded)
            ],
            out_specs=[pl.BlockSpec((TB, A), lambda i: (i, 0)),   # action
                       pl.BlockSpec((TB, 1), lambda i: (i, 0))],  # log_prob
        ),
        compiler_params=pltpu.CompilerParams(
            dimension_semantics=("parallel",),
            vmem_limit_bytes=48 * 1024 * 1024),
    )(x, w1p, b1p, w2p, b2p, whp, bhp, noise)
    return action, log_prob


# ----------------------------------------------------------------------------
# Pure-JAX reference (matmul_dtype=jnp.bfloat16 gives the matched-precision
# reference for the bf16-operand kernel; default is full f32).
# ----------------------------------------------------------------------------
def policy_reference(x, w1, b1, w2, b2, wm, bm, wd, bd, noise,
                     matmul_dtype=jnp.float32):
    md = matmul_dtype

    def dot(a, b):
        return jnp.dot(a.astype(md), b.astype(md),
                       preferred_element_type=jnp.float32)

    h1 = dot(x, w1) + b1
    a1 = jnp.maximum(h1, 0.0)
    h2 = jnp.maximum(dot(h1, w2) + b2, 0.0)
    h = h2 + a1
    mean = dot(h, wm) + bm
    log_dev = jnp.clip(dot(h, wd) + bd, LOG_STD_MIN, LOG_STD_MAX)
    std = jnp.exp(log_dev)
    pre = mean + std * noise
    action = jnp.tanh(pre) * ACTION_SCALE
    lp = (-((pre - mean) ** 2) / (2.0 * std * std)
          - log_dev - 0.5 * math.log(2.0 * math.pi))
    lp_sum = jnp.sum(lp, axis=-1, keepdims=True)
    corr = jnp.sum(jnp.log(1.0 - action * action + EPS), axis=-1, keepdims=True)
    return action, lp_sum - corr


def make_params(key, hidden_size, action_size):
    """PyTorch-style Linear init: U(-1/sqrt(fan_in), 1/sqrt(fan_in))."""
    def linear(k, fan_in, fan_out):
        kw, kb = jax.random.split(k)
        bound = 1.0 / math.sqrt(fan_in)
        w = jax.random.uniform(kw, (fan_in, fan_out), jnp.float32, -bound, bound)
        b = jax.random.uniform(kb, (1, fan_out), jnp.float32, -bound, bound)
        return w, b

    k1, k2, k3, k4 = jax.random.split(key, 4)
    w1, b1 = linear(k1, IN_FEATURES, hidden_size)
    w2, b2 = linear(k2, hidden_size, hidden_size)
    wd, bd = linear(k3, hidden_size, action_size)   # self.deviation
    wm, bm = linear(k4, hidden_size, action_size)   # self.mean
    return w1, b1, w2, b2, wm, bm, wd, bd


if __name__ == "__main__":
    B = 2
    HIDDEN = 32
    ACTION = 4

    key = jax.random.PRNGKey(0)
    k_param, k_x, k_noise = jax.random.split(key, 3)

    raw_params = make_params(k_param, HIDDEN, ACTION)
    x = jax.random.normal(k_x, (B, IN_FEATURES), jnp.float32)
    # Standard-normal noise for the reparameterized sample (mean + std * noise),
    # equivalent in distribution to torch.normal(mean, std).
    noise = jax.random.normal(k_noise, (B, ACTION), jnp.float32)

    padded_params = prepare_params(*raw_params)          # one-time, off hot path
    action, log_prob = policy_forward(x, noise, *padded_params)
    jax.block_until_ready((action, log_prob))

    # Matched-precision reference (same bf16 matmul operands, f32 accumulation).
    ref_action, ref_log_prob = policy_reference(
        x, *raw_params, noise, matmul_dtype=jnp.bfloat16)

    assert action.shape == (B, ACTION)
    assert log_prob.shape == (B, 1)
    assert bool(jnp.all(jnp.isfinite(action))) and bool(jnp.all(jnp.isfinite(log_prob)))
    assert bool(jnp.allclose(action, ref_action, rtol=1e-3, atol=1e-3))
    assert bool(jnp.allclose(log_prob, ref_log_prob, rtol=2e-3, atol=2e-3))
    print("KERNEL_OK")
</pallas_src>

<mosaic_0001>
module attributes {stable_mosaic.version = 11 : i64} {
  func.func @policy_kernel(%arg0: i32, %arg1: memref<2x348xf32, #tpu.memory_space<vmem>>, %arg2: memref<348x128xbf16, #tpu.memory_space<vmem>>, %arg3: memref<1x128xf32, #tpu.memory_space<vmem>>, %arg4: memref<128x128xbf16, #tpu.memory_space<vmem>>, %arg5: memref<1x128xf32, #tpu.memory_space<vmem>>, %arg6: memref<128x256xbf16, #tpu.memory_space<vmem>>, %arg7: memref<1x256xf32, #tpu.memory_space<vmem>>, %arg8: memref<2x4xf32, #tpu.memory_space<vmem>>, %arg9: memref<2x4xf32, #tpu.memory_space<vmem>>, %arg10: memref<2x1xf32, #tpu.memory_space<vmem>>) attributes {dimension_semantics = [#tpu.dimension_semantics<parallel>], iteration_bounds = array<i64: 1>, scalar_prefetch = 0 : i64, scratch_operands = 0 : i64, tpu.core_type = #tpu.core_type<tc>, window_params = [{transform_indices = @transform_0, window_bounds = array<i64: 2, 348>}, {pipeline_mode = #tpu.pipeline_mode<synchronous>, transform_indices = @transform_1, window_bounds = array<i64: 348, 128>}, {pipeline_mode = #tpu.pipeline_mode<synchronous>, transform_indices = @transform_2, window_bounds = array<i64: 1, 128>}, {pipeline_mode = #tpu.pipeline_mode<synchronous>, transform_indices = @transform_3, window_bounds = array<i64: 128, 128>}, {pipeline_mode = #tpu.pipeline_mode<synchronous>, transform_indices = @transform_4, window_bounds = array<i64: 1, 128>}, {pipeline_mode = #tpu.pipeline_mode<synchronous>, transform_indices = @transform_5, window_bounds = array<i64: 128, 256>}, {pipeline_mode = #tpu.pipeline_mode<synchronous>, transform_indices = @transform_6, window_bounds = array<i64: 1, 256>}, {transform_indices = @transform_7, window_bounds = array<i64: 2, 4>}, {transform_indices = @transform_8, window_bounds = array<i64: 2, 4>}, {transform_indices = @transform_9, window_bounds = array<i64: 2, 1>}]} {
    %c0 = arith.constant 0 : index
    %c0_0 = arith.constant 0 : index
    %0 = vector.load %arg1[%c0, %c0_0] : memref<2x348xf32, #tpu.memory_space<vmem>>, vector<2x348xf32>
    %1 = arith.truncf %0 : vector<2x348xf32> to vector<2x348xbf16>
    %c0_1 = arith.constant 0 : index
    %c0_2 = arith.constant 0 : index
    %2 = vector.load %arg2[%c0_1, %c0_2] : memref<348x128xbf16, #tpu.memory_space<vmem>>, vector<348x128xbf16>
    %cst = arith.constant dense<0.000000e+00> : vector<2x128xf32>
    %3 = tpu.matmul %1, %2, %cst {dimension_numbers = #tpu.dot_dimension_numbers<[1], [0], [0], [1], [0, 0, 1, 1], [], []>} : vector<2x348xbf16>, vector<348x128xbf16>, vector<2x128xf32> -> vector<2x128xf32>
    %c0_3 = arith.constant 0 : index
    %c0_4 = arith.constant 0 : index
    %4 = vector.load %arg3[%c0_3, %c0_4] : memref<1x128xf32, #tpu.memory_space<vmem>>, vector<1x128xf32>
    %5 = vector.broadcast %4 : vector<1x128xf32> to vector<2x128xf32>
    %6 = arith.addf %3, %5 : vector<2x128xf32>
    %cst_5 = arith.constant 0.000000e+00 : f32
    %7 = vector.broadcast %cst_5 : f32 to vector<2x128xf32>
    %8 = arith.maximumf %6, %7 : vector<2x128xf32>
    %9 = arith.truncf %6 : vector<2x128xf32> to vector<2x128xbf16>
    %c0_6 = arith.constant 0 : index
    %c0_7 = arith.constant 0 : index
    %10 = vector.load %arg4[%c0_6, %c0_7] : memref<128x128xbf16, #tpu.memory_space<vmem>>, vector<128x128xbf16>
    %cst_8 = arith.constant dense<0.000000e+00> : vector<2x128xf32>
    %11 = tpu.matmul %9, %10, %cst_8 {dimension_numbers = #tpu.dot_dimension_numbers<[1], [0], [0], [1], [0, 0, 1, 1], [], []>} : vector<2x128xbf16>, vector<128x128xbf16>, vector<2x128xf32> -> vector<2x128xf32>
    %c0_9 = arith.constant 0 : index
    %c0_10 = arith.constant 0 : index
    %12 = vector.load %arg5[%c0_9, %c0_10] : memref<1x128xf32, #tpu.memory_space<vmem>>, vector<1x128xf32>
    %13 = vector.broadcast %12 : vector<1x128xf32> to vector<2x128xf32>
    %14 = arith.addf %11, %13 : vector<2x128xf32>
    %cst_11 = arith.constant 0.000000e+00 : f32
    %15 = vector.broadcast %cst_11 : f32 to vector<2x128xf32>
    %16 = arith.maximumf %14, %15 : vector<2x128xf32>
    %17 = arith.addf %16, %8 : vector<2x128xf32>
    %18 = arith.truncf %17 : vector<2x128xf32> to vector<2x128xbf16>
    %c0_12 = arith.constant 0 : index
    %c0_13 = arith.constant 0 : index
    %19 = vector.load %arg6[%c0_12, %c0_13] : memref<128x256xbf16, #tpu.memory_space<vmem>>, vector<128x256xbf16>
    %cst_14 = arith.constant dense<0.000000e+00> : vector<2x256xf32>
    %20 = tpu.matmul %18, %19, %cst_14 {dimension_numbers = #tpu.dot_dimension_numbers<[1], [0], [0], [1], [0, 0, 1, 1], [], []>} : vector<2x128xbf16>, vector<128x256xbf16>, vector<2x256xf32> -> vector<2x256xf32>
    %c0_15 = arith.constant 0 : index
    %c0_16 = arith.constant 0 : index
    %21 = vector.load %arg7[%c0_15, %c0_16] : memref<1x256xf32, #tpu.memory_space<vmem>>, vector<1x256xf32>
    %22 = vector.broadcast %21 : vector<1x256xf32> to vector<2x256xf32>
    %23 = arith.addf %20, %22 : vector<2x256xf32>
    %c128_i32 = arith.constant 128 : i32
    %24 = tpu.dynamic_rotate %23 by %c128_i32 dim 1 : vector<2x256xf32>, i32 -> vector<2x256xf32>
    %25 = vector.extract_strided_slice %23 {offsets = [0, 0], sizes = [2, 4], strides = [1, 1]} : vector<2x256xf32> to vector<2x4xf32>
    %26 = vector.extract_strided_slice %24 {offsets = [0, 0], sizes = [2, 4], strides = [1, 1]} : vector<2x256xf32> to vector<2x4xf32>
    %cst_17 = arith.constant -2.000000e+01 : f32
    %cst_18 = arith.constant 5.000000e+00 : f32
    %27 = vector.broadcast %cst_17 : f32 to vector<2x4xf32>
    %28 = arith.maximumf %27, %26 : vector<2x4xf32>
    %29 = vector.broadcast %cst_18 : f32 to vector<2x4xf32>
    %30 = arith.minimumf %29, %28 : vector<2x4xf32>
    %31 = math.exp %30 : vector<2x4xf32>
    %c0_19 = arith.constant 0 : index
    %c0_20 = arith.constant 0 : index
    %32 = vector.load %arg8[%c0_19, %c0_20] : memref<2x4xf32, #tpu.memory_space<vmem>>, vector<2x4xf32>
    %33 = arith.mulf %31, %32 : vector<2x4xf32>
    %34 = arith.addf %25, %33 : vector<2x4xf32>
    %35 = math.tanh %34 : vector<2x4xf32>
    %cst_21 = arith.constant 4.000000e-01 : f32
    %36 = vector.broadcast %cst_21 : f32 to vector<2x4xf32>
    %37 = arith.mulf %35, %36 : vector<2x4xf32>
    %38 = arith.mulf %32, %32 : vector<2x4xf32>
    %cst_22 = arith.constant -5.000000e-01 : f32
    %39 = vector.broadcast %cst_22 : f32 to vector<2x4xf32>
    %40 = arith.mulf %39, %38 : vector<2x4xf32>
    %41 = arith.subf %40, %30 : vector<2x4xf32>
    %cst_23 = arith.constant 0.918938517 : f32
    %42 = vector.broadcast %cst_23 : f32 to vector<2x4xf32>
    %43 = arith.subf %41, %42 : vector<2x4xf32>
    %44 = arith.mulf %37, %37 : vector<2x4xf32>
    %cst_24 = arith.constant 1.000000e+00 : f32
    %45 = vector.broadcast %cst_24 : f32 to vector<2x4xf32>
    %46 = arith.subf %45, %44 : vector<2x4xf32>
    %cst_25 = arith.constant 9.99999997E-7 : f32
    %47 = vector.broadcast %cst_25 : f32 to vector<2x4xf32>
    %48 = arith.addf %46, %47 : vector<2x4xf32>
    %49 = math.log %48 : vector<2x4xf32>
    %50 = arith.subf %43, %49 : vector<2x4xf32>
    %cst_26 = arith.constant dense<0.000000e+00> : vector<2xf32>
    %51 = vector.multi_reduction <add>, %50, %cst_26 [1] : vector<2x4xf32> to vector<2xf32>
    %52 = vector.shape_cast %51 : vector<2xf32> to vector<2x1xf32>
    %c0_27 = arith.constant 0 : index
    %c0_28 = arith.constant 0 : index
    %53 = vector.load %arg9[%c0_27, %c0_28] : memref<2x4xf32, #tpu.memory_space<vmem>>, vector<2x4xf32>
    tpu.vector_store %arg9[%c0_27, %c0_28], %37 {strides = array<i32>} : memref<2x4xf32, #tpu.memory_space<vmem>>, vector<2x4xf32>,
    %c0_29 = arith.constant 0 : index
    %c0_30 = arith.constant 0 : index
    %54 = vector.load %arg10[%c0_29, %c0_30] : memref<2x1xf32, #tpu.memory_space<vmem>>, vector<2x1xf32>
    tpu.vector_store %arg10[%c0_29, %c0_30], %52 {strides = array<i32>} : memref<2x1xf32, #tpu.memory_space<vmem>>, vector<2x1xf32>,
    return
  }
  func.func @transform_0(%arg0: i32) -> (i32, i32) {
    %c0_i32 = arith.constant 0 : i32
    %c0_i32_0 = arith.constant 0 : i32
    return %arg0, %c0_i32 : i32, i32
  }
  func.func @transform_1(%arg0: i32) -> (i32, i32) {
    %c0_i32 = arith.constant 0 : i32
    %c0_i32_0 = arith.constant 0 : i32
    %c0_i32_1 = arith.constant 0 : i32
    return %c0_i32, %c0_i32_0 : i32, i32
  }
  func.func @transform_2(%arg0: i32) -> (i32, i32) {
    %c0_i32 = arith.constant 0 : i32
    %c0_i32_0 = arith.constant 0 : i32
    %c0_i32_1 = arith.constant 0 : i32
    return %c0_i32, %c0_i32_0 : i32, i32
  }
  func.func @transform_3(%arg0: i32) -> (i32, i32) {
    %c0_i32 = arith.constant 0 : i32
    %c0_i32_0 = arith.constant 0 : i32
    %c0_i32_1 = arith.constant 0 : i32
    return %c0_i32, %c0_i32_0 : i32, i32
  }
  func.func @transform_4(%arg0: i32) -> (i32, i32) {
    %c0_i32 = arith.constant 0 : i32
    %c0_i32_0 = arith.constant 0 : i32
    %c0_i32_1 = arith.constant 0 : i32
    return %c0_i32, %c0_i32_0 : i32, i32
  }
  func.func @transform_5(%arg0: i32) -> (i32, i32) {
    %c0_i32 = arith.constant 0 : i32
    %c0_i32_0 = arith.constant 0 : i32
    %c0_i32_1 = arith.constant 0 : i32
    return %c0_i32, %c0_i32_0 : i32, i32
  }
  func.func @transform_6(%arg0: i32) -> (i32, i32) {
    %c0_i32 = arith.constant 0 : i32
    %c0_i32_0 = arith.constant 0 : i32
    %c0_i32_1 = arith.constant 0 : i32
    return %c0_i32, %c0_i32_0 : i32, i32
  }
  func.func @transform_7(%arg0: i32) -> (i32, i32) {
    %c0_i32 = arith.constant 0 : i32
    %c0_i32_0 = arith.constant 0 : i32
    return %arg0, %c0_i32 : i32, i32
  }
  func.func @transform_8(%arg0: i32) -> (i32, i32) {
    %c0_i32 = arith.constant 0 : i32
    %c0_i32_0 = arith.constant 0 : i32
    return %arg0, %c0_i32 : i32, i32
  }
  func.func @transform_9(%arg0: i32) -> (i32, i32) {
    %c0_i32 = arith.constant 0 : i32
    %c0_i32_0 = arith.constant 0 : i32
    return %arg0, %c0_i32 : i32, i32
  }
}

</mosaic_0001>

<llo_original>
// kernel: policy_forward.1
$region0: #{policy_forward.1}
  #allocation0 [shape = 'u32[]', space=smem, size = 0x4, offset = 0x4, fixed_abs, tag = 'smem constant byte address 0x4 - core index']
  #allocation1 [shape = 'u32[144,128]{1,0:T(1,128)}', space=vmem, size = 0x12000, scoped, tag = 'internal scratch']
  %s0 = inlined_call_operand.hbm [shape: f32[2,348], index: 0, kind: input, shape index: {}]
  %s1 = inlined_call_operand.hbm [shape: bf16[348,128], index: 1, kind: input, shape index: {}]
  %s2 = inlined_call_operand.vmem [shape: f32[1,128], index: 2, kind: input, shape index: {}]
  %s3 = inlined_call_operand.hbm [shape: bf16[128,128], index: 3, kind: input, shape index: {}]
  %s4 = inlined_call_operand.vmem [shape: f32[1,128], index: 4, kind: input, shape index: {}]
  %s5 = inlined_call_operand.hbm [shape: bf16[128,256], index: 5, kind: input, shape index: {}]
  %s6 = inlined_call_operand.vmem [shape: f32[1,256], index: 6, kind: input, shape index: {}]
  %s7 = inlined_call_operand.hbm [shape: f32[2,4], index: 7, kind: input, shape index: {}]
  %s8 = inlined_call_operand.hbm [shape: f32[2,4], index: 8, kind: output, shape index: {0}]
  %s9 = inlined_call_operand.vmem [shape: f32[2,1], index: 9, kind: output, shape index: {1}]
  %10 = xla_tuple %s8, %s9
  %s11 = sld [smem:[#allocation0]]
  $region70: #{policy_forward.1} parent=0
    _
  %s13 = ssub.s32 1, %s11
  %s14 = scalar_select 0, %s13, %s11
  $region1: #{policy_forward.1} parent=0
    #allocation2 [shape = 'u8[3072]{0}', space=vmem, size = 0xc00, scoped, tag = 'input window, operand 0, single buffered']
    #allocation3 [shape = 's32[1]{0}', space=sflag, size = 0x4, scoped, tag = 'scoped memory for policy_forward.1']
    #allocation4 [shape = 's32[1]{0}', space=sflag, size = 0x4, scoped, tag = 'scoped memory for policy_forward.1']
    #allocation5 [shape = 'u8[90112]{0}', space=vmem, size = 0x16000, scoped, tag = 'input window, operand 1, single buffered']
    #allocation6 [shape = 's32[1]{0}', space=sflag, size = 0x4, scoped, tag = 'scoped memory for policy_forward.1']
    #allocation7 [shape = 'u8[32768]{0}', space=vmem, size = 0x8000, scoped, tag = 'input window, operand 3, single buffered']
    #allocation8 [shape = 'u8[65536]{0}', space=vmem, size = 0x10000, scoped, tag = 'input window, operand 5, single buffered']
    #allocation9 [shape = 's32[1]{0}', space=sflag, size = 0x4, scoped, tag = 'scoped memory for policy_forward.1']
    #allocation10 [shape = 'u8[1024]{0}', space=vmem, size = 0x400, scoped, tag = 'input window, operand 7, single buffered']
    #allocation11 [shape = 'u8[1024]{0}', space=vmem, size = 0x400, scoped, tag = 'output window, operand 0, single buffered']
    %15 = vsyncpa [#allocation3], 0
    %16 = vsyncpa [#allocation6], 0
    %17 = vsyncpa [#allocation9], 0
    %18 = vsyncpa [#allocation4], 0
    // Predicated region
    $region2: #{policy_forward.1} parent=1 // pred_check
      _
    $region3: #{policy_forward.1} parent=1 // pred_check_branch
      %20 = sbr.rel (0) target = $region5
    $region4: #{policy_forward.1} parent=1 // pred_region
      %s22 = ssub.s32 96, 96
      %23 = vsyncadd [#allocation3], %s22
      %s25 = sshll.u32 [#allocation2], 4
      %s26 = int_to_ptr.vmem [resolvable:$true] %s25
      %28 = dma.hbm_to_vmem [thread:$0]  %s0, 96, %s26, [#allocation3]
    $region5: #{policy_forward.1} parent=1 // pred_fallthru
      _
    // Predicated region
    $region6: #{policy_forward.1} parent=1 // pred_check
      _
    $region7: #{policy_forward.1} parent=1 // pred_check_branch
      %30 = sbr.rel (0) target = $region9
    $region8: #{policy_forward.1} parent=1 // pred_region
      %s32 = ssub.s32 2816, 2816
      %33 = vsyncadd [#allocation6], %s32
      %s34 = sshll.u32 [#allocation5], 4
      %s35 = int_to_ptr.vmem [resolvable:$true] %s34
      %40 = dma.hbm_to_vmem [thread:$0]  %s1, 2816, %s35, [#allocation6], 64, 64, 4
    $region9: #{policy_forward.1} parent=1 // pred_fallthru
      _
    // Predicated region
    $region10: #{policy_forward.1} parent=1 // pred_check
      _
    $region11: #{policy_forward.1} parent=1 // pred_check_branch
      %42 = sbr.rel (0) target = $region13
    $region12: #{policy_forward.1} parent=1 // pred_region
      _
    $region13: #{policy_forward.1} parent=1 // pred_fallthru
      _
    // Predicated region
    $region14: #{policy_forward.1} parent=1 // pred_check
      _
    $region15: #{policy_forward.1} parent=1 // pred_check_branch
      %44 = sbr.rel (0) target = $region17
    $region16: #{policy_forward.1} parent=1 // pred_region
      %s46 = ssub.s32 1024, 1024
      %47 = vsyncadd [#allocation6], %s46
      %s48 = sshll.u32 [#allocation7], 4
      %s49 = int_to_ptr.vmem [resolvable:$true] %s48
      %54 = dma.hbm_to_vmem [thread:$0]  %s3, 1024, %s49, [#allocation6], 64, 64, 4
    $region17: #{policy_forward.1} parent=1 // pred_fallthru
      _
    // Predicated region
    $region18: #{policy_forward.1} parent=1 // pred_check
      _
    $region19: #{policy_forward.1} parent=1 // pred_check_branch
      %56 = sbr.rel (0) target = $region21
    $region20: #{policy_forward.1} parent=1 // pred_region
      _
    $region21: #{policy_forward.1} parent=1 // pred_fallthru
      _
    // Predicated region
    $region22: #{policy_forward.1} parent=1 // pred_check
      _
    $region23: #{policy_forward.1} parent=1 // pred_check_branch
      %58 = sbr.rel (0) target = $region25
    $region24: #{policy_forward.1} parent=1 // pred_region
      %s60 = ssub.s32 2048, 2048
      %61 = vsyncadd [#allocation9], %s60
      %s62 = sshll.u32 [#allocation8], 4
      %s63 = int_to_ptr.vmem [resolvable:$true] %s62
      %68 = dma.hbm_to_vmem [thread:$0]  %s5, 2048, %s63, [#allocation9], 128, 128, 8
    $region25: #{policy_forward.1} parent=1 // pred_fallthru
      _
    // Predicated region
    $region26: #{policy_forward.1} parent=1 // pred_check
      _
    $region27: #{policy_forward.1} parent=1 // pred_check_branch
      %70 = sbr.rel (0) target = $region29
    $region28: #{policy_forward.1} parent=1 // pred_region
      _
    $region29: #{policy_forward.1} parent=1 // pred_fallthru
      _
    // Predicated region
    $region30: #{policy_forward.1} parent=1 // pred_check
      _
    $region31: #{policy_forward.1} parent=1 // pred_check_branch
      %72 = sbr.rel (0) target = $region33
    $region32: #{policy_forward.1} parent=1 // pred_region
      %s74 = ssub.s32 32, 32
      %75 = vsyncadd [#allocation9], %s74
      %s77 = sshll.u32 [#allocation10], 4
      %s78 = int_to_ptr.vmem [resolvable:$true] %s77
      %80 = dma.hbm_to_vmem [thread:$0]  %s7, 32, %s78, [#allocation9]
    $region33: #{policy_forward.1} parent=1 // pred_fallthru
      _
    // Predicated region
    $region34: #{policy_forward.1} parent=1 // pred_check
      _
    $region35: #{policy_forward.1} parent=1 // pred_check_branch
      %82 = sbr.rel (0) target = $region37
    $region36: #{policy_forward.1} parent=1 // pred_region
      %83 = dma.done [#allocation3], 96
    $region37: #{policy_forward.1} parent=1 // pred_fallthru
      _
    // Predicated region
    $region38: #{policy_forward.1} parent=1 // pred_check
      _
    $region39: #{policy_forward.1} parent=1 // pred_check_branch
      %85 = sbr.rel (0) target = $region41
    $region40: #{policy_forward.1} parent=1 // pred_region
      %86 = dma.done [#allocation6], 2816
    $region41: #{policy_forward.1} parent=1 // pred_fallthru
      _
    // Predicated region
    $region42: #{policy_forward.1} parent=1 // pred_check
      _
    $region43: #{policy_forward.1} parent=1 // pred_check_branch
      %88 = sbr.rel (0) target = $region45
    $region44: #{policy_forward.1} parent=1 // pred_region
      %89 = dma.done [#allocation6], 1024
    $region45: #{policy_forward.1} parent=1 // pred_fallthru
      _
    // Predicated region
    $region46: #{policy_forward.1} parent=1 // pred_check
      _
    $region47: #{policy_forward.1} parent=1 // pred_check_branch
      %91 = sbr.rel (0) target = $region49
    $region48: #{policy_forward.1} parent=1 // pred_region
      %92 = dma.done [#allocation9], 2048
    $region49: #{policy_forward.1} parent=1 // pred_fallthru
      _
    // Predicated region
    $region50: #{policy_forward.1} parent=1 // pred_check
      _
    $region51: #{policy_forward.1} parent=1 // pred_check_branch
      %94 = sbr.rel (0) target = $region53
    $region52: #{policy_forward.1} parent=1 // pred_region
      %95 = dma.done [#allocation9], 32
    $region53: #{policy_forward.1} parent=1 // pred_fallthru
      _
    %v97 = vld [vmem:[#allocation2] sm:$0x3f]
    %v99 = vcombine.high %v97, %v97
    %v101 = vunpack.c.l.s4 1983009808
    %v102 = vunpack.c.0.s8 %v101
    %v103 = vlaneseq
    %v104 = vshrl.u32 %v103, 7
    %v105 = vsub.s32 %v102, %v104
    %v106 = vrot.slane %v97, %v105
    %v108 = vunpack.c.l.s4 1983009808
    %v109 = vunpack.c.0.s8 %v108
    %v110 = vlaneseq
    %v111 = vshrl.u32 %v110, 7
    %v112 = vsub.s32 %v109, %v111
    %v113 = vrot.slane %v99, %v112
    %v114 = vcombine.high %v106, %v106
    %v118 = vpack.c.bf16 %v106, %v106
    %v119 = vpack.c.bf16 %v114, %v114
    %v120 = vpack.c.bf16 %v113, %v113
    %v121 = vld [vmem:[#allocation5] sm:$0xf]
    %v122 = vld [vmem:[#allocation5 + $0x4] sm:$0xf]
    %v123 = vld [vmem:[#allocation5 + $0x8] sm:$0xf]
    %v124 = vld [vmem:[#allocation5 + $0xc] sm:$0xf]
    %v125 = vld [vmem:[#allocation5 + $0x10] sm:$0xf]
    %v126 = vld [vmem:[#allocation5 + $0x14] sm:$0xf]
    %v127 = vld [vmem:[#allocation5 + $0x18] sm:$0xf]
    %v128 = vld [vmem:[#allocation5 + $0x1c] sm:$0xf]
    %v129 = vld [vmem:[#allocation5 + $0x20] sm:$0xf]
    %v130 = vld [vmem:[#allocation5 + $0x24] sm:$0xf]
    %v131 = vld [vmem:[#allocation5 + $0x28] sm:$0xf]
    %v132 = vld [vmem:[#allocation5 + $0x2c] sm:$0xf]
    %v133 = vld [vmem:[#allocation5 + $0x30] sm:$0xf]
    %v134 = vld [vmem:[#allocation5 + $0x34] sm:$0xf]
    %v135 = vld [vmem:[#allocation5 + $0x38] sm:$0xf]
    %v136 = vld [vmem:[#allocation5 + $0x3c] sm:$0xf]
    %v137 = vld [vmem:[#allocation5 + $0x40] sm:$0xf]
    %v138 = vld [vmem:[#allocation5 + $0x44] sm:$0xf]
    %v139 = vld [vmem:[#allocation5 + $0x48] sm:$0xf]
    %v140 = vld [vmem:[#allocation5 + $0x4c] sm:$0xf]
    %v141 = vld [vmem:[#allocation5 + $0x50] sm:$0xf]
    %v142 = vld [vmem:[#allocation5 + $0x54] sm:$0xf]
    %v143 = vld [vmem:[#allocation5 + $0x58] sm:$0xf]
    %v144 = vld [vmem:[#allocation5 + $0x5c] sm:$0xf]
    %v145 = vld [vmem:[#allocation5 + $0x60] sm:$0xf]
    %v146 = vld [vmem:[#allocation5 + $0x64] sm:$0xf]
    %v147 = vld [vmem:[#allocation5 + $0x68] sm:$0xf]
    %v148 = vld [vmem:[#allocation5 + $0x6c] sm:$0xf]
    %v149 = vld [vmem:[#allocation5 + $0x70] sm:$0xf]
    %v150 = vld [vmem:[#allocation5 + $0x74] sm:$0xf]
    %v151 = vld [vmem:[#allocation5 + $0x78] sm:$0xf]
    %v152 = vld [vmem:[#allocation5 + $0x7c] sm:$0xf]
    %v153 = vld [vmem:[#allocation5 + $0x80] sm:$0xf]
    %v154 = vld [vmem:[#allocation5 + $0x84] sm:$0xf]
    %v155 = vld [vmem:[#allocation5 + $0x88] sm:$0xf]
    %v156 = vld [vmem:[#allocation5 + $0x8c] sm:$0xf]
    %v157 = vld [vmem:[#allocation5 + $0x90] sm:$0xf]
    %v158 = vld [vmem:[#allocation5 + $0x94] sm:$0xf]
    %v159 = vld [vmem:[#allocation5 + $0x98] sm:$0xf]
    %v160 = vld [vmem:[#allocation5 + $0x9c] sm:$0xf]
    %v161 = vld [vmem:[#allocation5 + $0xa0] sm:$0xf]
    %v162 = vld [vmem:[#allocation5 + $0xa4] sm:$0xf]
    %v163 = vld [vmem:[#allocation5 + $0xa8] sm:$0xf]
    %v164 = vld [vmem:[#allocation5 + $0xac] sm:$0x3]
    %v165 = vld [vmem:[%s2] sm:$0x1]
    %v167 = vlaneseq
    %v168 = vshrl.u32 %v167, 7
    %v169 = vsub.s32 0, %v168
    %v170 = vrot.slane %v165, %v169
    %v216 = vunpack.c.l.b16 %v121
    %v217 = vunpack.c.l.b16 %v122
    %v218 = vunpack.c.l.b16 %v123
    %v219 = vunpack.c.l.b16 %v124
    %v220 = vunpack.c.l.b16 %v125
    %v221 = vunpack.c.l.b16 %v126
    %v222 = vunpack.c.l.b16 %v127
    %v223 = vunpack.c.l.b16 %v128
    %v224 = vunpack.c.l.b16 %v129
    %v225 = vunpack.c.l.b16 %v130
    %v226 = vunpack.c.l.b16 %v131
    %v227 = vunpack.c.l.b16 %v132
    %v228 = vunpack.c.l.b16 %v133
    %v229 = vunpack.c.l.b16 %v134
    %v230 = vunpack.c.l.b16 %v135
    %v231 = vunpack.c.l.b16 %v136
    %v232 = vunpack.c.l.b16 %v137
    %v233 = vunpack.c.l.b16 %v138
    %v234 = vunpack.c.l.b16 %v139
    %v235 = vunpack.c.l.b16 %v140
    %v236 = vunpack.c.l.b16 %v141
    %v237 = vunpack.c.l.b16 %v142
    %v238 = vunpack.c.l.b16 %v143
    %v239 = vunpack.c.l.b16 %v144
    %v240 = vunpack.c.l.b16 %v145
    %v241 = vunpack.c.l.b16 %v146
    %v242 = vunpack.c.l.b16 %v147
    %v243 = vunpack.c.l.b16 %v148
    %v244 = vunpack.c.l.b16 %v149
    %v245 = vunpack.c.l.b16 %v150
    %v246 = vunpack.c.l.b16 %v151
    %v247 = vunpack.c.l.b16 %v152
    %v248 = vunpack.c.l.b16 %v153
    %v249 = vunpack.c.l.b16 %v154
    %v250 = vunpack.c.l.b16 %v155
    %v251 = vunpack.c.l.b16 %v156
    %v252 = vunpack.c.l.b16 %v157
    %v253 = vunpack.c.l.b16 %v158
    %v254 = vunpack.c.l.b16 %v159
    %v255 = vunpack.c.l.b16 %v160
    %v256 = vunpack.c.l.b16 %v161
    %v257 = vunpack.c.l.b16 %v162
    %v258 = vunpack.c.l.b16 %v163
    %v259 = vunpack.c.l.b16 %v164
    %v260 = vpack.c.b16 %v217, %v216
    %v261 = vpack.c.b16 %v219, %v218
    %v262 = vpack.c.b16 %v221, %v220
    %v263 = vpack.c.b16 %v223, %v222
    %v264 = vpack.c.b16 %v225, %v224
    %v265 = vpack.c.b16 %v227, %v226
    %v266 = vpack.c.b16 %v229, %v228
    %v267 = vpack.c.b16 %v231, %v230
    %v268 = vpack.c.b16 %v233, %v232
    %v269 = vpack.c.b16 %v235, %v234
    %v270 = vpack.c.b16 %v237, %v236
    %v271 = vpack.c.b16 %v239, %v238
    %v272 = vpack.c.b16 %v241, %v240
    %v273 = vpack.c.b16 %v243, %v242
    %v274 = vpack.c.b16 %v245, %v244
    %v275 = vpack.c.b16 %v247, %v246
    %v276 = vpack.c.b16 %v249, %v248
    %v277 = vpack.c.b16 %v251, %v250
    %v278 = vpack.c.b16 %v253, %v252
    %v279 = vpack.c.b16 %v255, %v254
    %v280 = vpack.c.b16 %v257, %v256
    %v281 = vpack.c.b16 %v259, %v258
    %vm303 = vcmask 752640
    %v305 = vsel %vm303, %v120, 0
    %vm307 = vcmask 1045504
    %v309 = vsel %vm307, %v281, 0
    %311 = vmatprep.subr.bf16.mxu0 0
    %312 = vmatpush1.bf16.msra.mxu0 %v260
    %313 = vmatprep.subr.bf16.mxu0 0
    %314 = vmatpush1.bf16.msra.mxu0 %v261
    %315 = vmatprep.subr.bf16.mxu0 0
    %316 = vmatpush1.bf16.msra.mxu0 %v262
    %317 = vmatprep.subr.bf16.mxu0 0
    %318 = vmatpush1.bf16.msra.mxu0 %v263
    %319 = vmatprep.subr.bf16.mxu0 0
    %320 = vmatpush1.bf16.msra.mxu0 %v264
    %321 = vmatprep.subr.bf16.mxu0 0
    %322 = vmatpush1.bf16.msra.mxu0 %v265
    %323 = vmatprep.subr.bf16.mxu0 0
    %324 = vmatpush1.bf16.msra.mxu0 %v266
    %325 = vmatprep.subr.bf16.mxu0 0
    %326 = vmatpush1.bf16.msra.mxu0 %v267
    %327 = vmatprep.subr.bf16.mxu0 0
    %328 = vmatpush1.bf16.msra.mxu0 %v268
    %329 = vmatprep.subr.bf16.mxu0 0
    %330 = vmatpush1.bf16.msra.mxu0 %v269
    %331 = vmatprep.subr.bf16.mxu0 0
    %332 = vmatpush1.bf16.msra.mxu0 %v270
    %333 = vmatprep.subr.bf16.mxu0 0
    %334 = vmatpush1.bf16.msra.mxu0 %v271
    %335 = vmatprep.subr.bf16.mxu0 0
    %336 = vmatpush1.bf16.msra.mxu0 %v272
    %337 = vmatprep.subr.bf16.mxu0 0
    %338 = vmatpush1.bf16.msra.mxu0 %v273
    %339 = vmatprep.subr.bf16.mxu0 0
    %340 = vmatpush1.bf16.msra.mxu0 %v274
    %341 = vmatprep.subr.bf16.mxu0 0
    %342 = vmatpush1.bf16.msra.mxu0 %v275
    %343 = vmatprep.mubr.bf16.mxu0 %v119
    %344 = vmatmul.mubr.bf16.gmra.mrb[0].mxu0 %v118
    %v345 = vpop.f32.mrb[0].mxu0
    %v346 = vadd.f32 %v170, %v345
    %v347 = vpop.f32.mrb[0].mxu0
    %v348 = vpop.f32.mrb[0].mxu0
    %v349 = vpop.f32.mrb[0].mxu0
    %350 = vdwg.mxu0
    %351 = vmatprep.subr.bf16.mxu0 0
    %352 = vmatpush1.bf16.msra.mxu0 %v276
    %353 = vmatprep.subr.bf16.mxu0 0
    %354 = vmatpush1.bf16.msra.mxu0 %v277
    %355 = vmatprep.subr.bf16.mxu0 0
    %356 = vmatpush1.bf16.msra.mxu0 %v278
    %357 = vmatprep.subr.bf16.mxu0 0
    %358 = vmatpush1.bf16.msra.mxu0 %v279
    %359 = vmatprep.subr.bf16.mxu0 0
    %360 = vmatpush1.bf16.msra.mxu0 %v280
    %361 = vmatprep.subr.bf16.mxu0 0
    %362 = vmatpush1.bf16.msra.mxu0 %v309
    %363 = vmatprep.subr.bf16.mxu0 0
    %364 = vmatpush1.bf16.msra.mxu0 0
    %365 = vmatprep.subr.bf16.mxu0 0
    %366 = vmatpush1.bf16.msra.mxu0 0
    %367 = vmatprep.subr.bf16.mxu0 0
    %368 = vmatpush1.bf16.msra.mxu0 0
    %369 = vmatprep.subr.bf16.mxu0 0
    %370 = vmatpush1.bf16.msra.mxu0 0
    %371 = vmatprep.subr.bf16.mxu0 0
    %372 = vmatpush1.bf16.msra.mxu0 0
    %373 = vmatprep.subr.bf16.mxu0 0
    %374 = vmatpush1.bf16.msra.mxu0 0
    %375 = vmatprep.subr.bf16.mxu0 0
    %376 = vmatpush1.bf16.msra.mxu0 0
    %377 = vmatprep.subr.bf16.mxu0 0
    %378 = vmatpush1.bf16.msra.mxu0 0
    %379 = vmatprep.subr.bf16.mxu0 0
    %380 = vmatpush1.bf16.msra.mxu0 0
    %381 = vmatprep.subr.bf16.mxu0 0
    %382 = vmatpush1.bf16.msra.mxu0 0
    %383 = vmatprep.mubr.bf16.mxu0 0
    %384 = vmatmul.mubr.bf16.gmra.mrb[0].mxu0 %v305
    %v385 = vpop.f32.mrb[0].mxu0
    %v386 = vadd.f32 %v346, %v385
    %v387 = vpop.f32.mrb[0].mxu0
    %v388 = vpop.f32.mrb[0].mxu0
    %v389 = vpop.f32.mrb[0].mxu0
    %390 = vdwg.mxu0
    %v391 = vmax.f32 %v386, 0.0
    %v392 = vpack.c.bf16 %v386, %v386
    %v393 = vld [vmem:[#allocation7] sm:$0xf]
    %v394 = vld [vmem:[#allocation7 + $0x4] sm:$0xf]
    %v395 = vld [vmem:[#allocation7 + $0x8] sm:$0xf]
    %v396 = vld [vmem:[#allocation7 + $0xc] sm:$0xf]
    %v397 = vld [vmem:[#allocation7 + $0x10] sm:$0xf]
    %v398 = vld [vmem:[#allocation7 + $0x14] sm:$0xf]
    %v399 = vld [vmem:[#allocation7 + $0x18] sm:$0xf]
    %v400 = vld [vmem:[#allocation7 + $0x1c] sm:$0xf]
    %v401 = vld [vmem:[#allocation7 + $0x20] sm:$0xf]
    %v402 = vld [vmem:[#allocation7 + $0x24] sm:$0xf]
    %v403 = vld [vmem:[#allocation7 + $0x28] sm:$0xf]
    %v404 = vld [vmem:[#allocation7 + $0x2c] sm:$0xf]
    %v405 = vld [vmem:[#allocation7 + $0x30] sm:$0xf]
    %v406 = vld [vmem:[#allocation7 + $0x34] sm:$0xf]
    %v407 = vld [vmem:[#allocation7 + $0x38] sm:$0xf]
    %v408 = vld [vmem:[#allocation7 + $0x3c] sm:$0xf]
    %v409 = vld [vmem:[%s4] sm:$0x1]
    %v411 = vlaneseq
    %v412 = vshrl.u32 %v411, 7
    %v413 = vsub.s32 0, %v412
    %v414 = vrot.slane %v409, %v413
    %v432 = vunpack.c.l.b16 %v393
    %v433 = vunpack.c.l.b16 %v394
    %v434 = vunpack.c.l.b16 %v395
    %v435 = vunpack.c.l.b16 %v396
    %v436 = vunpack.c.l.b16 %v397
    %v437 = vunpack.c.l.b16 %v398
    %v438 = vunpack.c.l.b16 %v399
    %v439 = vunpack.c.l.b16 %v400
    %v440 = vunpack.c.l.b16 %v401
    %v441 = vunpack.c.l.b16 %v402
    %v442 = vunpack.c.l.b16 %v403
    %v443 = vunpack.c.l.b16 %v404
    %v444 = vunpack.c.l.b16 %v405
    %v445 = vunpack.c.l.b16 %v406
    %v446 = vunpack.c.l.b16 %v407
    %v447 = vunpack.c.l.b16 %v408
    %v448 = vpack.c.b16 %v433, %v432
    %v449 = vpack.c.b16 %v435, %v434
    %v450 = vpack.c.b16 %v437, %v436
    %v451 = vpack.c.b16 %v439, %v438
    %v452 = vpack.c.b16 %v441, %v440
    %v453 = vpack.c.b16 %v443, %v442
    %v454 = vpack.c.b16 %v445, %v444
    %v455 = vpack.c.b16 %v447, %v446
    %464 = vmatprep.subr.bf16.mxu0 0
    %465 = vmatpush1.bf16.msra.mxu0 %v448
    %466 = vmatprep.subr.bf16.mxu0 0
    %467 = vmatpush1.bf16.msra.mxu0 %v449
    %468 = vmatprep.subr.bf16.mxu0 0
    %469 = vmatpush1.bf16.msra.mxu0 %v450
    %470 = vmatprep.subr.bf16.mxu0 0
    %471 = vmatpush1.bf16.msra.mxu0 %v451
    %472 = vmatprep.subr.bf16.mxu0 0
    %473 = vmatpush1.bf16.msra.mxu0 %v452
    %474 = vmatprep.subr.bf16.mxu0 0
    %475 = vmatpush1.bf16.msra.mxu0 %v453
    %476 = vmatprep.subr.bf16.mxu0 0
    %477 = vmatpush1.bf16.msra.mxu0 %v454
    %478 = vmatprep.subr.bf16.mxu0 0
    %479 = vmatpush1.bf16.msra.mxu0 %v455
    %480 = vmatprep.subr.bf16.mxu0 0
    %481 = vmatpush1.bf16.msra.mxu0 0
    %482 = vmatprep.subr.bf16.mxu0 0
    %483 = vmatpush1.bf16.msra.mxu0 0
    %484 = vmatprep.subr.bf16.mxu0 0
    %485 = vmatpush1.bf16.msra.mxu0 0
    %486 = vmatprep.subr.bf16.mxu0 0
    %487 = vmatpush1.bf16.msra.mxu0 0
    %488 = vmatprep.subr.bf16.mxu0 0
    %489 = vmatpush1.bf16.msra.mxu0 0
    %490 = vmatprep.subr.bf16.mxu0 0
    %491 = vmatpush1.bf16.msra.mxu0 0
    %492 = vmatprep.subr.bf16.mxu0 0
    %493 = vmatpush1.bf16.msra.mxu0 0
    %494 = vmatprep.subr.bf16.mxu0 0
    %495 = vmatpush1.bf16.msra.mxu0 0
    %496 = vmatprep.mubr.bf16.mxu0 0
    %497 = vmatmul.mubr.bf16.gmra.mrb[0].mxu0 %v392
    %v498 = vpop.f32.mrb[0].mxu0
    %v499 = vadd.f32 %v414, %v498
    %v500 = vpop.f32.mrb[0].mxu0
    %v501 = vpop.f32.mrb[0].mxu0
    %v502 = vpop.f32.mrb[0].mxu0
    %503 = vdwg.mxu0
    %v504 = vmax.f32 %v499, 0.0
    %v505 = vadd.f32 %v504, %v391
    %v506 = vpack.c.bf16 %v505, %v505
    %v507 = vld [vmem:[#allocation8] sm:$0xff]
    %v508 = vld [vmem:[#allocation8 + $0x8] sm:$0xff]
    %v509 = vld [vmem:[#allocation8 + $0x10] sm:$0xff]
    %v510 = vld [vmem:[#allocation8 + $0x18] sm:$0xff]
    %v511 = vld [vmem:[#allocation8 + $0x20] sm:$0xff]
    %v512 = vld [vmem:[#allocation8 + $0x28] sm:$0xff]
    %v513 = vld [vmem:[#allocation8 + $0x30] sm:$0xff]
    %v514 = vld [vmem:[#allocation8 + $0x38] sm:$0xff]
    %v515 = vld [vmem:[#allocation8 + $0x40] sm:$0xff]
    %v516 = vld [vmem:[#allocation8 + $0x48] sm:$0xff]
    %v517 = vld [vmem:[#allocation8 + $0x50] sm:$0xff]
    %v518 = vld [vmem:[#allocation8 + $0x58] sm:$0xff]
    %v519 = vld [vmem:[#allocation8 + $0x60] sm:$0xff]
    %v520 = vld [vmem:[#allocation8 + $0x68] sm:$0xff]
    %v521 = vld [vmem:[#allocation8 + $0x70] sm:$0xff]
    %v522 = vld [vmem:[#allocation8 + $0x78] sm:$0xff]
    %v523 = vld [vmem:[%s6] sm:$0x3]
    %v525 = vlaneseq
    %v526 = vshrl.u32 %v525, 7
    %v527 = vsub.s32 0, %v526
    %v528 = vrot.slane %v523, %v527
    %v529 = vlaneseq
    %v530 = vshrl.u32 %v529, 7
    %v531 = vsub.s32 1, %v530
    %v532 = vrot.slane %v523, %v531
    %v551 = vunpack.c.l.b16 %v507
    %v552 = vunpack.c.h.b16 %v507
    %v553 = vunpack.c.l.b16 %v508
    %v554 = vunpack.c.h.b16 %v508
    %v555 = vunpack.c.l.b16 %v509
    %v556 = vunpack.c.h.b16 %v509
    %v557 = vunpack.c.l.b16 %v510
    %v558 = vunpack.c.h.b16 %v510
    %v559 = vunpack.c.l.b16 %v511
    %v560 = vunpack.c.h.b16 %v511
    %v561 = vunpack.c.l.b16 %v512
    %v562 = vunpack.c.h.b16 %v512
    %v563 = vunpack.c.l.b16 %v513
    %v564 = vunpack.c.h.b16 %v513
    %v565 = vunpack.c.l.b16 %v514
    %v566 = vunpack.c.h.b16 %v514
    %v567 = vunpack.c.l.b16 %v515
    %v568 = vunpack.c.h.b16 %v515
    %v569 = vunpack.c.l.b16 %v516
    %v570 = vunpack.c.h.b16 %v516
    %v571 = vunpack.c.l.b16 %v517
    %v572 = vunpack.c.h.b16 %v517
    %v573 = vunpack.c.l.b16 %v518
    %v574 = vunpack.c.h.b16 %v518
    %v575 = vunpack.c.l.b16 %v519
    %v576 = vunpack.c.h.b16 %v519
    %v577 = vunpack.c.l.b16 %v520
    %v578 = vunpack.c.h.b16 %v520
    %v579 = vunpack.c.l.b16 %v521
    %v580 = vunpack.c.h.b16 %v521
    %v581 = vunpack.c.l.b16 %v522
    %v582 = vunpack.c.h.b16 %v522
    %v583 = vpack.c.b16 %v553, %v551
    %v584 = vpack.c.b16 %v554, %v552
    %v585 = vpack.c.b16 %v557, %v555
    %v586 = vpack.c.b16 %v558, %v556
    %v587 = vpack.c.b16 %v561, %v559
    %v588 = vpack.c.b16 %v562, %v560
    %v589 = vpack.c.b16 %v565, %v563
    %v590 = vpack.c.b16 %v566, %v564
    %v591 = vpack.c.b16 %v569, %v567
    %v592 = vpack.c.b16 %v570, %v568
    %v593 = vpack.c.b16 %v573, %v571
    %v594 = vpack.c.b16 %v574, %v572
    %v595 = vpack.c.b16 %v577, %v575
    %v596 = vpack.c.b16 %v578, %v576
    %v597 = vpack.c.b16 %v581, %v579
    %v598 = vpack.c.b16 %v582, %v580
    %615 = vmatprep.subr.bf16.mxu0 %v584
    %616 = vmatpush1.bf16.msra.mxu0 %v583
    %617 = vmatprep.subr.bf16.mxu0 %v586
    %618 = vmatpush1.bf16.msra.mxu0 %v585
    %619 = vmatprep.subr.bf16.mxu0 %v588
    %620 = vmatpush1.bf16.msra.mxu0 %v587
    %621 = vmatprep.subr.bf16.mxu0 %v590
    %622 = vmatpush1.bf16.msra.mxu0 %v589
    %623 = vmatprep.subr.bf16.mxu0 %v592
    %624 = vmatpush1.bf16.msra.mxu0 %v591
    %625 = vmatprep.subr.bf16.mxu0 %v594
    %626 = vmatpush1.bf16.msra.mxu0 %v593
    %627 = vmatprep.subr.bf16.mxu0 %v596
    %628 = vmatpush1.bf16.msra.mxu0 %v595
    %629 = vmatprep.subr.bf16.mxu0 %v598
    %630 = vmatpush1.bf16.msra.mxu0 %v597
    %631 = vmatprep.subr.bf16.mxu0 0
    %632 = vmatpush1.bf16.msra.mxu0 0
    %633 = vmatprep.subr.bf16.mxu0 0
    %634 = vmatpush1.bf16.msra.mxu0 0
    %635 = vmatprep.subr.bf16.mxu0 0
    %636 = vmatpush1.bf16.msra.mxu0 0
    %637 = vmatprep.subr.bf16.mxu0 0
    %638 = vmatpush1.bf16.msra.mxu0 0
    %639 = vmatprep.subr.bf16.mxu0 0
    %640 = vmatpush1.bf16.msra.mxu0 0
    %641 = vmatprep.subr.bf16.mxu0 0
    %642 = vmatpush1.bf16.msra.mxu0 0
    %643 = vmatprep.subr.bf16.mxu0 0
    %644 = vmatpush1.bf16.msra.mxu0 0
    %645 = vmatprep.subr.bf16.mxu0 0
    %646 = vmatpush1.bf16.msra.mxu0 0
    %647 = vmatprep.mubr.bf16.mxu0 0
    %648 = vmatmul.mubr.bf16.gmra.mrb[0].mxu0 %v506
    %v649 = vpop.f32.mrb[0].mxu0
    %v650 = vadd.f32 %v528, %v649
    %v651 = vpop.f32.mrb[0].mxu0
    %v652 = vadd.f32 %v532, %v651
    %v653 = vpop.f32.mrb[0].mxu0
    %v654 = vpop.f32.mrb[0].mxu0
    %655 = vdwg.mxu0
    %v656 = vmax.f32 %v652, -20.0
    %v657 = vmin.f32 %v656, 5.0
    %v658 = vmul.f32 %v657, 1.442695
    %v659 = vpow.pop %v658
    %v660 = vld [vmem:[#allocation10] sm:$0x3]
    %v661 = vmul.f32 %v659, %v660
    %v662 = vadd.f32 %v650, %v661
    %v663 = vtanh.pop %v662
    %v664 = vmul.f32 %v663, 0.4
    %v665 = vmul.f32 %v660, %v660
    %v666 = vmul.f32 %v665, -0.5
    %v667 = vsub.f32 %v666, %v657
    %v668 = vsub.f32 %v667, 0.9189385
    %v669 = vmul.f32 %v664, %v664
    %v670 = vsub.f32 1.0, %v669
    %v671 = vadd.f32 %v670, 1e-06
    %v672 = vlog2.pop %v671
    %v673 = vmul.f32 %v672, 0.6931472
    %v674 = vsub.f32 %v668, %v673
    %vm675 = vcmask 25600
    %v676 = vsel %vm675, %v674, 0.0
    %677 = vadd.xlane.f32.xlu0 %v676
    %v678 = vpop.xlane.xlu0 %677
    %679 = vst.msk [vmem:[#allocation11] sm:$0x3] %vm675, %v664
    %vm680 = vcmask 1024
    %681 = vst.msk [vmem:[%s9] sm:$0x3] %vm680, %v678
    // Predicated region
    $region54: #{policy_forward.1} parent=1 // pred_check
      _
    $region55: #{policy_forward.1} parent=1 // pred_check_branch
      %683 = sbr.rel (0) target = $region57
    $region56: #{policy_forward.1} parent=1 // pred_region
      %s685 = ssub.s32 32, 32
      %686 = vsyncadd [#allocation4], %s685
      %s688 = sshll.u32 [#allocation11], 4
      %s689 = int_to_ptr.vmem [resolvable:$true] %s688
      %691 = dma.vmem_to_hbm [thread:$0]  %s689, 32, %s8, [#allocation4]
    $region57: #{policy_forward.1} parent=1 // pred_fallthru
      _
    // Predicated region
    $region58: #{policy_forward.1} parent=1 // pred_check
      _
    $region59: #{policy_forward.1} parent=1 // pred_check_branch
      %693 = sbr.rel (0) target = $region61
    $region60: #{policy_forward.1} parent=1 // pred_region
      _
    $region61: #{policy_forward.1} parent=1 // pred_fallthru
      _
    // Predicated region
    $region62: #{policy_forward.1} parent=1 // pred_check
      _
    $region63: #{policy_forward.1} parent=1 // pred_check_branch
      %695 = sbr.rel (0) target = $region65
    $region64: #{policy_forward.1} parent=1 // pred_region
      %696 = dma.done [#allocation4], 32
    $region65: #{policy_forward.1} parent=1 // pred_fallthru
      _
    // Predicated region
    $region66: #{policy_forward.1} parent=1 // pred_check
      _
    $region67: #{policy_forward.1} parent=1 // pred_check_branch
      %698 = sbr.rel (0) target = $region69
    $region68: #{policy_forward.1} parent=1 // pred_region
      _
    $region69: #{policy_forward.1} parent=1 // pred_fallthru
      _
    %699 = vsyncpa [#allocation3], 1
    %700 = vsyncpa [#allocation6], 1
    %701 = vsyncpa [#allocation9], 1
    %702 = vsyncpa [#allocation4], 1

</llo_original>
